<compile_context>
chip_gen: v6e
topology: v6e:2x2x1
jax: 0.10.0
libtpu: 0.0.40
codegen_flags: <defaults>
</compile_context>

<pallas_src>
import functools

import jax
import jax.numpy as jnp
from jax.experimental import pallas as pl
from jax.experimental.pallas import tpu as pltpu

MASK = -10.0


def _round_up(x, m):
    return ((x + m - 1) // m) * m


def _lse_pool_kernel(s_ref, o_ref, *scratch, inv_temperature, n_total, tn,
                     num_k, exp_dtype):
    # s_ref: (tm, tn) tile of scores in VMEM
    # o_ref: (tm, 1) output tile (resident across the column/k grid axis)
    # scratch (multi-tile path only): (tm, 1) running max, (tm, 1) running sum
    k = pl.program_id(1)

    s = s_ref[...].astype(jnp.float32)                        # (tm, tn)
    # Sentinel -> -inf (exact equality, matching torch).  Fuse in the padded-
    # column mask when the column tiling is ragged (trace-time decision).
    invalid = s == MASK
    if n_total % tn != 0:
        col = jax.lax.broadcasted_iota(jnp.int32, s.shape, 1) + k * tn
        invalid = invalid | (col >= n_total)
    s = jnp.where(invalid, -jnp.inf, s)

    def _exp_tile(z):
        # Big (tm, tn) exp; optionally in bf16 for EUP relief on v6e/v7x.
        if exp_dtype != jnp.float32:
            return jnp.exp(z.astype(exp_dtype)).astype(jnp.float32)
        return jnp.exp(z)

    if num_k == 1:
        # Whole reduction fits in a single tile: plain (non-streaming) LSE.
        m = jnp.max(s, axis=-1, keepdims=True)                # (tm, 1)
        m_safe = jnp.where(jnp.isfinite(m), m, 0.0)           # all-masked rows
        p = _exp_tile((s - m_safe) * inv_temperature)
        lse = jnp.log(jnp.sum(p, axis=-1, keepdims=True)) + m * inv_temperature
        o_ref[...] = lse.astype(o_ref.dtype)
        return

    m_scr, l_scr = scratch

    @pl.when(k == 0)
    def _init():
        m_scr[...] = jnp.full(m_scr.shape, -jnp.inf, dtype=m_scr.dtype)
        l_scr[...] = jnp.zeros(l_scr.shape, dtype=l_scr.dtype)

    m_prev = m_scr[...]                                       # (tm, 1)
    m_new = jnp.maximum(m_prev, jnp.max(s, axis=-1, keepdims=True))
    # Avoid (-inf) - (-inf) = nan for fully-masked rows.
    m_safe = jnp.where(jnp.isfinite(m_new), m_new, 0.0)

    # Fold 1/temperature into the exponent (max taken on unscaled scores).
    p_sum = jnp.sum(_exp_tile((s - m_safe) * inv_temperature),
                    axis=-1, keepdims=True)                   # (tm, 1)
    # Running-sum rescale; tiny (tm,1) — always f32 for accuracy.
    alpha = jnp.exp((m_prev - m_safe) * inv_temperature)
    l_scr[...] = alpha * l_scr[...] + p_sum
    m_scr[...] = m_new

    @pl.when(k == num_k - 1)
    def _finalize():
        # All-masked rows: l == 0, m == -inf  ->  -inf (matches torch).
        lse = jnp.log(l_scr[...]) + m_scr[...] * inv_temperature
        o_ref[...] = lse.astype(o_ref.dtype)


def lse_pooling(sims, temperature=0.1, *, block_rows=None, block_cols=2048,
                exp_dtype=jnp.float32, target_tile_bytes=4 * 1024 * 1024):
    """LSE pooling over the last axis of a (B, M, N) similarity tensor."""
    assert sims.ndim == 3, "LSEPooling expects a 3-D input (B, M, N)"
    B, M, N = sims.shape
    R = B * M
    x = sims.reshape(R, N)                                    # free reshape
    itemsize = jnp.dtype(sims.dtype).itemsize

    # Column tile: full N when it fits (no masking / no padding), otherwise a
    # 128-aligned streaming tile; the ragged tail is masked in-kernel.
    if N <= block_cols:
        tn = N
    else:
        tn = max(128, (block_cols // 128) * 128)

    # Row tile: ~target_tile_bytes per input tile (good DMA / per-step-overhead
    # ratio), multiple of 8, modest cap so double-buffering stays small.
    if block_rows is None:
        tm = (target_tile_bytes // max(1, tn * itemsize)) // 8 * 8
        tm = int(min(max(tm, 8), 4096))
    else:
        tm = max(8, _round_up(block_rows, 8))
    tm = min(tm, _round_up(R, 8))

    grid_r = pl.cdiv(R, tm)
    grid_k = pl.cdiv(N, tn)

    kernel = functools.partial(
        _lse_pool_kernel,
        inv_temperature=1.0 / temperature,
        n_total=N,
        tn=tn,
        num_k=grid_k,
        exp_dtype=exp_dtype,
    )

    # Scratch only needed when streaming the reduction over several tiles.
    scratch = ([] if grid_k == 1 else
               [pltpu.VMEM((tm, 1), jnp.float32),   # running max
                pltpu.VMEM((tm, 1), jnp.float32)])  # running sum of exp

    out = pl.pallas_call(
        kernel,
        out_shape=jax.ShapeDtypeStruct((grid_r * tm, 1), sims.dtype),
        grid_spec=pltpu.PrefetchScalarGridSpec(
            num_scalar_prefetch=0,
            grid=(grid_r, grid_k),
            in_specs=[pl.BlockSpec((tm, tn), lambda i, k: (i, k))],
            out_specs=pl.BlockSpec((tm, 1), lambda i, k: (i, 0)),
            scratch_shapes=scratch,
        ),
        compiler_params=pltpu.CompilerParams(
            dimension_semantics=("parallel", "arbitrary"),
            vmem_limit_bytes=32 * 1024 * 1024,
        ),
    )(x)
    # Drop padded rows, restore (B, M).
    return out[:R, 0].reshape(B, M)


def _reference(sims, temperature=0.1):
    s = jnp.where(sims == MASK, -jnp.inf, sims)
    s = s / temperature
    return jax.nn.logsumexp(s, axis=-1)


if __name__ == "__main__":
    root = jax.random.PRNGKey(0)
    k1, k2, k3, k4, k5, k6 = jax.random.split(root, 6)

    # Test 1: small shapes, single column tile (fast path), fully-masked row.
    B, M, N = 2, 8, 128
    sims = jax.random.normal(k1, (B, M, N), dtype=jnp.float32)
    mask_pattern = jax.random.uniform(k2, (B, M, N)) < 0.2
    sims = jnp.where(mask_pattern, jnp.float32(MASK), sims)
    sims = sims.at[0, 3, :].set(jnp.float32(MASK))   # all-masked row -> -inf
    out = jax.block_until_ready(lse_pooling(sims, temperature=0.1))
    ref = _reference(sims, temperature=0.1)
    assert out.shape == (B, M)
    assert jnp.allclose(out, ref, atol=1e-4, rtol=1e-4), (out, ref)

    # Test 2: ragged rows/cols + forced multi-tile streaming reduction
    # (exercises online LSE accumulation, row padding and column masking).
    B2, M2, N2 = 2, 23, 300
    sims2 = jax.random.normal(k3, (B2, M2, N2), dtype=jnp.float32)
    mp2 = jax.random.uniform(k4, (B2, M2, N2)) < 0.2
    sims2 = jnp.where(mp2, jnp.float32(MASK), sims2)
    out2 = jax.block_until_ready(
        lse_pooling(sims2, temperature=0.1, block_rows=16, block_cols=128))
    ref2 = _reference(sims2, temperature=0.1)
    assert out2.shape == (B2, M2)
    assert jnp.allclose(out2, ref2, atol=1e-4, rtol=1e-4), (out2, ref2)

    # Test 3: N larger than the default column tile -> streaming path with
    # default (adaptive) tiling and a ragged last column tile.
    B3, M3, N3 = 1, 16, 2200
    sims3 = jax.random.normal(k5, (B3, M3, N3), dtype=jnp.float32)
    mp3 = jax.random.uniform(k6, (B3, M3, N3)) < 0.2
    sims3 = jnp.where(mp3, jnp.float32(MASK), sims3)
    out3 = jax.block_until_ready(lse_pooling(sims3, temperature=0.1))
    ref3 = _reference(sims3, temperature=0.1)
    assert out3.shape == (B3, M3)
    assert jnp.allclose(out3, ref3, atol=1e-4, rtol=1e-4), (out3, ref3)

    print("KERNEL_OK")
</pallas_src>

<mosaic_0001>
module attributes {stable_mosaic.version = 11 : i64} {
  func.func @_lse_pool_kernel(%arg0: i32, %arg1: i32, %arg2: memref<16x128xf32, #tpu.memory_space<vmem>>, %arg3: memref<16x1xf32, #tpu.memory_space<vmem>>) attributes {dimension_semantics = [#tpu.dimension_semantics<parallel>, #tpu.dimension_semantics<arbitrary>], iteration_bounds = array<i64: 1, 1>, scalar_prefetch = 0 : i64, scratch_operands = 0 : i64, tpu.core_type = #tpu.core_type<tc>, window_params = [{transform_indices = @transform_0, window_bounds = array<i64: 16, 128>}, {transform_indices = @transform_1, window_bounds = array<i64: 16, 1>}]} {
    %c0 = arith.constant 0 : index
    %c0_0 = arith.constant 0 : index
    %0 = vector.load %arg2[%c0, %c0_0] : memref<16x128xf32, #tpu.memory_space<vmem>>, vector<16x128xf32>
    %cst = arith.constant -1.000000e+01 : f32
    %1 = vector.broadcast %cst : f32 to vector<16x128xf32>
    %2 = arith.cmpf oeq, %0, %1 : vector<16x128xf32>
    %cst_1 = arith.constant 0xFF800000 : f32
    %3 = vector.broadcast %cst_1 : f32 to vector<16x128xf32>
    %4 = arith.select %2, %3, %0 : vector<16x128xi1>, vector<16x128xf32>
    %cst_2 = arith.constant dense<0xFF800000> : vector<16xf32>
    %5 = vector.multi_reduction <maximumf>, %4, %cst_2 [1] : vector<16x128xf32> to vector<16xf32>
    %6 = vector.shape_cast %5 : vector<16xf32> to vector<16x1xf32>
    %7 = tpu.weird %6 : vector<16x1xf32> -> vector<16x1xi1>
    %cst_3 = arith.constant dense<true> : vector<16x1xi1>
    %8 = arith.xori %7, %cst_3 : vector<16x1xi1>
    %cst_4 = arith.constant 0.000000e+00 : f32
    %9 = vector.broadcast %cst_4 : f32 to vector<16x1xf32>
    %10 = arith.select %8, %6, %9 : vector<16x1xi1>, vector<16x1xf32>
    %11 = vector.broadcast %10 : vector<16x1xf32> to vector<16x128xf32>
    %12 = arith.subf %4, %11 : vector<16x128xf32>
    %cst_5 = arith.constant 1.000000e+01 : f32
    %13 = vector.broadcast %cst_5 : f32 to vector<16x128xf32>
    %14 = arith.mulf %12, %13 : vector<16x128xf32>
    %15 = math.exp %14 : vector<16x128xf32>
    %cst_6 = arith.constant dense<0.000000e+00> : vector<16xf32>
    %16 = vector.multi_reduction <add>, %15, %cst_6 [1] : vector<16x128xf32> to vector<16xf32>
    %17 = vector.shape_cast %16 : vector<16xf32> to vector<16x1xf32>
    %18 = math.log %17 : vector<16x1xf32>
    %cst_7 = arith.constant 1.000000e+01 : f32
    %19 = vector.broadcast %cst_7 : f32 to vector<16x1xf32>
    %20 = arith.mulf %6, %19 : vector<16x1xf32>
    %21 = arith.addf %18, %20 : vector<16x1xf32>
    %c0_8 = arith.constant 0 : index
    %c0_9 = arith.constant 0 : index
    %22 = vector.load %arg3[%c0_8, %c0_9] : memref<16x1xf32, #tpu.memory_space<vmem>>, vector<16x1xf32>
    tpu.vector_store %arg3[%c0_8, %c0_9], %21 {strides = array<i32>} : memref<16x1xf32, #tpu.memory_space<vmem>>, vector<16x1xf32>,
    return
  }
  func.func @transform_0(%arg0: i32, %arg1: i32) -> (i32, i32) {
    %c0_i32 = arith.constant 0 : i32
    return %arg0, %arg1 : i32, i32
  }
  func.func @transform_1(%arg0: i32, %arg1: i32) -> (i32, i32) {
    %c0_i32 = arith.constant 0 : i32
    %c0_i32_0 = arith.constant 0 : i32
    return %arg0, %c0_i32 : i32, i32
  }
}

</mosaic_0001>

<llo_original>
// kernel: tpu_custom_call.1
$region0: #{tpu_custom_call.1}
  #allocation0 [shape = 'u32[]', space=smem, size = 0x4, offset = 0x4, fixed_abs, tag = 'smem constant byte address 0x4 - core index']
  #allocation1 [shape = 'u32[144,128]{1,0:T(1,128)}', space=vmem, size = 0x12000, scoped, tag = 'internal scratch']
  %s0 = inlined_call_operand.hbm [shape: f32[16,128], index: 0, kind: input, shape index: {}]
  %s1 = inlined_call_operand.vmem [shape: f32[16,1], index: 1, kind: output, shape index: {}]
  %s2 = sld [smem:[#allocation0]]
  $region18: #{tpu_custom_call.1} parent=0
    _
  %s4 = ssub.s32 1, %s2
  %s5 = scalar_select 0, %s4, %s2
  $region1: #{tpu_custom_call.1} parent=0
    #allocation2 [shape = 'u8[8192]{0}', space=vmem, size = 0x2000, scoped, tag = 'input window, operand 0, single buffered']
    #allocation3 [shape = 's32[1]{0}', space=sflag, size = 0x4, scoped, tag = 'scoped memory for tpu_custom_call.1']
    %6 = vsyncpa [#allocation3], 0
    // Predicated region
    $region2: #{tpu_custom_call.1} parent=1 // pred_check
      _
    $region3: #{tpu_custom_call.1} parent=1 // pred_check_branch
      %8 = sbr.rel (0) target = $region5
    $region4: #{tpu_custom_call.1} parent=1 // pred_region
      %s10 = ssub.s32 256, 256
      %11 = vsyncadd [#allocation3], %s10
      %s12 = sshll.u32 [#allocation2], 4
      %s13 = int_to_ptr.vmem [resolvable:$true] %s12
      %18 = dma.hbm_to_vmem [thread:$0]  %s0, 256, %s13, [#allocation3], 128, 128, 8
    $region5: #{tpu_custom_call.1} parent=1 // pred_fallthru
      _
    // Predicated region
    $region6: #{tpu_custom_call.1} parent=1 // pred_check
      _
    $region7: #{tpu_custom_call.1} parent=1 // pred_check_branch
      %20 = sbr.rel (0) target = $region9
    $region8: #{tpu_custom_call.1} parent=1 // pred_region
      %21 = dma.done [#allocation3], 256
    $region9: #{tpu_custom_call.1} parent=1 // pred_fallthru
      _
    %v22 = vld [vmem:[#allocation2] sm:$0xff]
    %v23 = vld [vmem:[#allocation2 + $0x8] sm:$0xff]
    %vm24 = vcmp.eq.f32.partialorder %v22, -10.0
    %vm25 = vcmp.eq.f32.partialorder %v23, -10.0
    %v26 = vsel %vm24, -inf, %v22
    %v27 = vsel %vm25, -inf, %v23
    %28 = vmax.xlane.f32.xlu0 %v26
    %v29 = vpop.xlane.xlu0 %28
    %30 = vmax.xlane.f32.xlu0 %v27
    %v31 = vpop.xlane.xlu0 %30
    %vm32 = vweird.f32 %v29
    %vm33 = vweird.f32 %v31
    %vm34 = vmxor %vm32, 1
    %vm35 = vmxor %vm33, 1
    %v36 = vsel %vm34, %v29, 0.0
    %v37 = vsel %vm35, %v31, 0.0
    %v38 = vsub.f32 %v26, %v36
    %v39 = vsub.f32 %v27, %v37
    %v40 = vmul.f32 %v38, 10.0
    %v41 = vmul.f32 %v39, 10.0
    %v42 = vmul.f32 %v40, 1.442695
    %v43 = vpow.pop %v42
    %v44 = vmul.f32 %v41, 1.442695
    %v45 = vpow.pop %v44
    %46 = vadd.xlane.f32.xlu0 %v43
    %v47 = vpop.xlane.xlu0 %46
    %48 = vadd.xlane.f32.xlu0 %v45
    %v49 = vpop.xlane.xlu0 %48
    %v50 = vlog2.pop %v47
    %v51 = vmul.f32 %v50, 0.6931472
    %v52 = vlog2.pop %v49
    %v53 = vmul.f32 %v52, 0.6931472
    %v54 = vmul.f32 %v29, 10.0
    %v55 = vmul.f32 %v31, 10.0
    %v56 = vadd.f32 %v51, %v54
    %v57 = vadd.f32 %v53, %v55
    %vm58 = vcmask 7168
    %59 = vst.msk [vmem:[%s1] sm:$0xff] %vm58, %v56
    %60 = vst.msk [vmem:[%s1 + $0x8] sm:$0xff] %vm58, %v57
    // Predicated region
    $region10: #{tpu_custom_call.1} parent=1 // pred_check
      _
    $region11: #{tpu_custom_call.1} parent=1 // pred_check_branch
      %62 = sbr.rel (0) target = $region13
    $region12: #{tpu_custom_call.1} parent=1 // pred_region
      _
    $region13: #{tpu_custom_call.1} parent=1 // pred_fallthru
      _
    // Predicated region
    $region14: #{tpu_custom_call.1} parent=1 // pred_check
      _
    $region15: #{tpu_custom_call.1} parent=1 // pred_check_branch
      %64 = sbr.rel (0) target = $region17
    $region16: #{tpu_custom_call.1} parent=1 // pred_region
      _
    $region17: #{tpu_custom_call.1} parent=1 // pred_fallthru
      _
    %65 = vsyncpa [#allocation3], 1

</llo_original>
